<compile_context>
chip_gen: v7x
topology: tpu7x:2x2x1
jax: 0.10.0
libtpu: 0.0.40
codegen_flags: <defaults>
</compile_context>

<pallas_src>
import functools

import jax
import jax.numpy as jnp
from jax.experimental import pallas as pl
from jax.experimental.pallas import tpu as pltpu


def _round_up(n: int, m: int) -> int:
    return ((n + m - 1) // m) * m


def mlp_kernel(x_ref, w_in_ref, w_hid_ref, w_out_ref, b_ref, o_ref, *,
               n_hidden: int, h_pad: int, d_out_pad: int):
    """One (TB, D_in_pad) batch tile through the whole MLP.

    x_ref:     (TB, D_in_pad)          f32 activation tile
    w_in_ref:  (D_in_pad, H_pad)       bf16 first-layer weight (resident)
    w_hid_ref: (n_hidden, H_pad, H_pad) bf16 hidden-layer weights (resident)
    w_out_ref: (H_pad, D_out_pad)      bf16 output-layer weight (resident)
    b_ref:     (8, max(H_pad, D_out_pad)) f32 bias slab, row l = layer l bias
    o_ref:     (TB, D_out_pad)         f32 lane-dense output tile
    """
    b = b_ref[...]                                           # tiny, lives in vregs

    # Input layer + ReLU (bf16 operands, f32 accumulation).
    h = jnp.dot(x_ref[...].astype(jnp.bfloat16), w_in_ref[...],
                preferred_element_type=jnp.float32)
    h = jnp.maximum(h + b[0:1, :h_pad], 0.0)

    # Hidden layers + ReLU.
    for l in range(n_hidden):
        h = jnp.dot(h.astype(jnp.bfloat16), w_hid_ref[l],
                    preferred_element_type=jnp.float32)
        h = jnp.maximum(h + b[l + 1:l + 2, :h_pad], 0.0)

    # Output layer (no ReLU), narrow lane-dense writeback.
    out = jnp.dot(h.astype(jnp.bfloat16), w_out_ref[...],
                  preferred_element_type=jnp.float32)
    o_ref[...] = (out + b[n_hidden + 1:n_hidden + 2, :d_out_pad]).astype(o_ref.dtype)


def pack_params(params):
    """Pad/pack per-layer weights & biases once; reuse across forward calls.

    params: list of (W [in, out], b [out]) for the 5 layers (W already stored
    [in, out], i.e. transposed vs nn.Linear, so the kernel computes x @ W + b).
    Zero padding keeps numerics exact (padded lanes stay 0 through ReLU).
    """
    n_layers = len(params)
    d_in, h = params[0][0].shape
    d_out = params[-1][0].shape[1]
    d_in_pad = _round_up(d_in, 128)
    h_pad = _round_up(h, 128)
    d_out_pad = _round_up(d_out, 128)
    bias_w = max(h_pad, d_out_pad)

    w_in = jnp.pad(params[0][0].astype(jnp.bfloat16),
                   ((0, d_in_pad - d_in), (0, h_pad - h)))
    w_hid = jnp.stack(
        [jnp.pad(w.astype(jnp.bfloat16), ((0, h_pad - h), (0, h_pad - h)))
         for w, _ in params[1:-1]], axis=0)                  # (n_hidden, H_pad, H_pad)
    w_out = jnp.pad(params[-1][0].astype(jnp.bfloat16),
                    ((0, h_pad - h), (0, d_out_pad - d_out)))

    rows = [jnp.pad(b.reshape(-1).astype(jnp.float32), (0, bias_w - b.size))
            for _, b in params]
    b_slab = jnp.pad(jnp.stack(rows, axis=0), ((0, 8 - n_layers), (0, 0)))

    return (w_in, w_hid, w_out, b_slab), (d_in, h, d_out)


@functools.partial(jax.jit, static_argnames=("d_out", "block_b"))
def net_forward(x, w_in, w_hid, w_out, b_slab, *, d_out: int, block_b: int = 512):
    B, d_in = x.shape
    d_in_pad, h_pad = w_in.shape
    n_hidden = w_hid.shape[0]
    d_out_pad = w_out.shape[1]

    # Batch tiling: multiple of 8; give the "parallel" grid >=2 steps when the
    # batch allows so v7x's 2 TensorCores both get work (no-op on v5e/v6e).
    tb = min(block_b, _round_up(B, 8))
    if B > 8 and _round_up(B, tb) // tb < 2:
        tb = _round_up((B + 1) // 2, 8)
    b_pad = _round_up(B, tb)

    x_pad = jnp.pad(x.astype(jnp.float32),
                    ((0, b_pad - B), (0, d_in_pad - d_in)))

    # VMEM budget: single-buffered resident bf16 weights + f32 biases,
    # double-buffered x/out tiles, plus activation headroom.
    resident = (w_in.size + w_hid.size + w_out.size) * 2 + b_slab.size * 4
    streamed = 2 * tb * (d_in_pad + d_out_pad) * 4
    act = 2 * tb * h_pad * 4
    vmem_limit = int(min(max(2 * (resident + streamed + act), 16 << 20), 64 << 20))

    grid = (b_pad // tb,)
    kernel = functools.partial(mlp_kernel, n_hidden=n_hidden, h_pad=h_pad,
                               d_out_pad=d_out_pad)
    out = pl.pallas_call(
        kernel,
        out_shape=jax.ShapeDtypeStruct((b_pad, d_out_pad), jnp.float32),
        grid=grid,
        in_specs=[
            pl.BlockSpec((tb, d_in_pad), lambda i: (i, 0)),        # x streams
            pl.BlockSpec((d_in_pad, h_pad), lambda i: (0, 0),      # resident
                         pipeline_mode=pl.Buffered(1)),
            pl.BlockSpec((n_hidden, h_pad, h_pad), lambda i: (0, 0, 0),
                         pipeline_mode=pl.Buffered(1)),
            pl.BlockSpec((h_pad, d_out_pad), lambda i: (0, 0),
                         pipeline_mode=pl.Buffered(1)),
            pl.BlockSpec(b_slab.shape, lambda i: (0, 0),
                         pipeline_mode=pl.Buffered(1)),
        ],
        out_specs=pl.BlockSpec((tb, d_out_pad), lambda i: (i, 0)),
        compiler_params=pltpu.CompilerParams(
            dimension_semantics=("parallel",),
            vmem_limit_bytes=vmem_limit),
    )(x_pad, w_in, w_hid, w_out, b_slab)

    # Drop batch/feature padding, then mirror PyTorch's `.squeeze()`.
    return jnp.squeeze(out[:B, :d_out])


def init_params(key, d_in, h, d_out=1):
    """Deterministic init (Kaiming-uniform-like bounds, like nn.Linear)."""
    dims = [(d_in, h), (h, h), (h, h), (h, h), (h, d_out)]
    params = []
    for i, (fan_in, fan_out) in enumerate(dims):
        kw, kb, key = jax.random.split(jax.random.fold_in(key, i), 3)
        bound = 1.0 / jnp.sqrt(jnp.float32(fan_in))
        w = jax.random.uniform(kw, (fan_in, fan_out), jnp.float32, -bound, bound)
        b = jax.random.uniform(kb, (fan_out,), jnp.float32, -bound, bound)
        params.append((w, b))
    return params


def net_forward_ref(x, params):
    """Pure f32 reference matching the PyTorch module."""
    h = x
    for w, b in params[:-1]:
        h = jnp.maximum(h @ w + b, 0.0)
    w, b = params[-1]
    return jnp.squeeze(h @ w + b)


if __name__ == "__main__":
    B, D_in, H, D_out = 8, 16, 32, 1

    key = jax.random.PRNGKey(0)
    kx, kp = jax.random.split(key)
    x = jax.random.normal(kx, (B, D_in), jnp.float32)
    params = init_params(kp, D_in, H, D_out)

    packed, (_, _, d_out) = pack_params(params)   # pack once, reuse per call
    y = net_forward(x, *packed, d_out=d_out)
    y = jax.block_until_ready(y)

    y_ref = net_forward_ref(x, params)
    assert y.shape == (B,), y.shape
    # Tolerance relaxed for bf16 weights/activations in the matmuls (f32 accum).
    assert jnp.allclose(y, y_ref, atol=5e-2, rtol=5e-2), "mismatch vs reference"

    print("KERNEL_OK")
</pallas_src>

<mosaic_0001>
module attributes {stable_mosaic.version = 11 : i64} {
  func.func @mlp_kernel(%arg0: i32, %arg1: memref<8x128xf32, #tpu.memory_space<vmem>>, %arg2: memref<128x128xbf16, #tpu.memory_space<vmem>>, %arg3: memref<3x128x128xbf16, #tpu.memory_space<vmem>>, %arg4: memref<128x128xbf16, #tpu.memory_space<vmem>>, %arg5: memref<8x128xf32, #tpu.memory_space<vmem>>, %arg6: memref<8x128xf32, #tpu.memory_space<vmem>>) attributes {dimension_semantics = [#tpu.dimension_semantics<parallel>], iteration_bounds = array<i64: 1>, scalar_prefetch = 0 : i64, scratch_operands = 0 : i64, tpu.core_type = #tpu.core_type<tc>, window_params = [{transform_indices = @transform_0, window_bounds = array<i64: 8, 128>}, {pipeline_mode = #tpu.pipeline_mode<synchronous>, transform_indices = @transform_1, window_bounds = array<i64: 128, 128>}, {pipeline_mode = #tpu.pipeline_mode<synchronous>, transform_indices = @transform_2, window_bounds = array<i64: 3, 128, 128>}, {pipeline_mode = #tpu.pipeline_mode<synchronous>, transform_indices = @transform_3, window_bounds = array<i64: 128, 128>}, {pipeline_mode = #tpu.pipeline_mode<synchronous>, transform_indices = @transform_4, window_bounds = array<i64: 8, 128>}, {transform_indices = @transform_5, window_bounds = array<i64: 8, 128>}]} {
    %c0 = arith.constant 0 : index
    %c0_0 = arith.constant 0 : index
    %0 = vector.load %arg5[%c0, %c0_0] : memref<8x128xf32, #tpu.memory_space<vmem>>, vector<8x128xf32>
    %c0_1 = arith.constant 0 : index
    %c0_2 = arith.constant 0 : index
    %1 = vector.load %arg1[%c0_1, %c0_2] : memref<8x128xf32, #tpu.memory_space<vmem>>, vector<8x128xf32>
    %2 = arith.truncf %1 : vector<8x128xf32> to vector<8x128xbf16>
    %c0_3 = arith.constant 0 : index
    %c0_4 = arith.constant 0 : index
    %3 = vector.load %arg2[%c0_3, %c0_4] : memref<128x128xbf16, #tpu.memory_space<vmem>>, vector<128x128xbf16>
    %cst = arith.constant dense<0.000000e+00> : vector<8x128xf32>
    %4 = tpu.matmul %2, %3, %cst {dimension_numbers = #tpu.dot_dimension_numbers<[1], [0], [0], [1], [0, 0, 1, 1], [], []>} : vector<8x128xbf16>, vector<128x128xbf16>, vector<8x128xf32> -> vector<8x128xf32>
    %5 = vector.extract_strided_slice %0 {offsets = [0, 0], sizes = [1, 128], strides = [1, 1]} : vector<8x128xf32> to vector<1x128xf32>
    %6 = vector.broadcast %5 : vector<1x128xf32> to vector<8x128xf32>
    %7 = arith.addf %4, %6 : vector<8x128xf32>
    %cst_5 = arith.constant 0.000000e+00 : f32
    %8 = vector.broadcast %cst_5 : f32 to vector<8x128xf32>
    %9 = arith.maximumf %7, %8 : vector<8x128xf32>
    %10 = arith.truncf %9 : vector<8x128xf32> to vector<8x128xbf16>
    %c0_6 = arith.constant 0 : index
    %c0_7 = arith.constant 0 : index
    %c0_8 = arith.constant 0 : index
    %11 = vector.load %arg3[%c0_6, %c0_7, %c0_8] : memref<3x128x128xbf16, #tpu.memory_space<vmem>>, vector<1x128x128xbf16>
    %12 = vector.shape_cast %11 : vector<1x128x128xbf16> to vector<128x128xbf16>
    %cst_9 = arith.constant dense<0.000000e+00> : vector<8x128xf32>
    %13 = tpu.matmul %10, %12, %cst_9 {dimension_numbers = #tpu.dot_dimension_numbers<[1], [0], [0], [1], [0, 0, 1, 1], [], []>} : vector<8x128xbf16>, vector<128x128xbf16>, vector<8x128xf32> -> vector<8x128xf32>
    %14 = vector.extract_strided_slice %0 {offsets = [1, 0], sizes = [1, 128], strides = [1, 1]} : vector<8x128xf32> to vector<1x128xf32>
    %15 = vector.broadcast %14 : vector<1x128xf32> to vector<8x128xf32>
    %16 = arith.addf %13, %15 : vector<8x128xf32>
    %cst_10 = arith.constant 0.000000e+00 : f32
    %17 = vector.broadcast %cst_10 : f32 to vector<8x128xf32>
    %18 = arith.maximumf %16, %17 : vector<8x128xf32>
    %19 = arith.truncf %18 : vector<8x128xf32> to vector<8x128xbf16>
    %c1 = arith.constant 1 : index
    %c0_11 = arith.constant 0 : index
    %c0_12 = arith.constant 0 : index
    %20 = vector.load %arg3[%c1, %c0_11, %c0_12] : memref<3x128x128xbf16, #tpu.memory_space<vmem>>, vector<1x128x128xbf16>
    %21 = vector.shape_cast %20 : vector<1x128x128xbf16> to vector<128x128xbf16>
    %cst_13 = arith.constant dense<0.000000e+00> : vector<8x128xf32>
    %22 = tpu.matmul %19, %21, %cst_13 {dimension_numbers = #tpu.dot_dimension_numbers<[1], [0], [0], [1], [0, 0, 1, 1], [], []>} : vector<8x128xbf16>, vector<128x128xbf16>, vector<8x128xf32> -> vector<8x128xf32>
    %23 = vector.extract_strided_slice %0 {offsets = [2, 0], sizes = [1, 128], strides = [1, 1]} : vector<8x128xf32> to vector<1x128xf32>
    %24 = vector.broadcast %23 : vector<1x128xf32> to vector<8x128xf32>
    %25 = arith.addf %22, %24 : vector<8x128xf32>
    %cst_14 = arith.constant 0.000000e+00 : f32
    %26 = vector.broadcast %cst_14 : f32 to vector<8x128xf32>
    %27 = arith.maximumf %25, %26 : vector<8x128xf32>
    %28 = arith.truncf %27 : vector<8x128xf32> to vector<8x128xbf16>
    %c2 = arith.constant 2 : index
    %c0_15 = arith.constant 0 : index
    %c0_16 = arith.constant 0 : index
    %29 = vector.load %arg3[%c2, %c0_15, %c0_16] : memref<3x128x128xbf16, #tpu.memory_space<vmem>>, vector<1x128x128xbf16>
    %30 = vector.shape_cast %29 : vector<1x128x128xbf16> to vector<128x128xbf16>
    %cst_17 = arith.constant dense<0.000000e+00> : vector<8x128xf32>
    %31 = tpu.matmul %28, %30, %cst_17 {dimension_numbers = #tpu.dot_dimension_numbers<[1], [0], [0], [1], [0, 0, 1, 1], [], []>} : vector<8x128xbf16>, vector<128x128xbf16>, vector<8x128xf32> -> vector<8x128xf32>
    %32 = vector.extract_strided_slice %0 {offsets = [3, 0], sizes = [1, 128], strides = [1, 1]} : vector<8x128xf32> to vector<1x128xf32>
    %33 = vector.broadcast %32 : vector<1x128xf32> to vector<8x128xf32>
    %34 = arith.addf %31, %33 : vector<8x128xf32>
    %cst_18 = arith.constant 0.000000e+00 : f32
    %35 = vector.broadcast %cst_18 : f32 to vector<8x128xf32>
    %36 = arith.maximumf %34, %35 : vector<8x128xf32>
    %37 = arith.truncf %36 : vector<8x128xf32> to vector<8x128xbf16>
    %c0_19 = arith.constant 0 : index
    %c0_20 = arith.constant 0 : index
    %38 = vector.load %arg4[%c0_19, %c0_20] : memref<128x128xbf16, #tpu.memory_space<vmem>>, vector<128x128xbf16>
    %cst_21 = arith.constant dense<0.000000e+00> : vector<8x128xf32>
    %39 = tpu.matmul %37, %38, %cst_21 {dimension_numbers = #tpu.dot_dimension_numbers<[1], [0], [0], [1], [0, 0, 1, 1], [], []>} : vector<8x128xbf16>, vector<128x128xbf16>, vector<8x128xf32> -> vector<8x128xf32>
    %40 = vector.extract_strided_slice %0 {offsets = [4, 0], sizes = [1, 128], strides = [1, 1]} : vector<8x128xf32> to vector<1x128xf32>
    %41 = vector.broadcast %40 : vector<1x128xf32> to vector<8x128xf32>
    %42 = arith.addf %39, %41 : vector<8x128xf32>
    %c0_22 = arith.constant 0 : index
    %c0_23 = arith.constant 0 : index
    %43 = vector.load %arg6[%c0_22, %c0_23] : memref<8x128xf32, #tpu.memory_space<vmem>>, vector<8x128xf32>
    tpu.vector_store %arg6[%c0_22, %c0_23], %42 {strides = array<i32>} : memref<8x128xf32, #tpu.memory_space<vmem>>, vector<8x128xf32>,
    return
  }
  func.func @transform_0(%arg0: i32) -> (i32, i32) {
    %c0_i32 = arith.constant 0 : i32
    %c0_i32_0 = arith.constant 0 : i32
    return %arg0, %c0_i32 : i32, i32
  }
  func.func @transform_1(%arg0: i32) -> (i32, i32) {
    %c0_i32 = arith.constant 0 : i32
    %c0_i32_0 = arith.constant 0 : i32
    %c0_i32_1 = arith.constant 0 : i32
    return %c0_i32, %c0_i32_0 : i32, i32
  }
  func.func @transform_2(%arg0: i32) -> (i32, i32, i32) {
    %c0_i32 = arith.constant 0 : i32
    %c0_i32_0 = arith.constant 0 : i32
    %c0_i32_1 = arith.constant 0 : i32
    %c0_i32_2 = arith.constant 0 : i32
    return %c0_i32, %c0_i32_0, %c0_i32_1 : i32, i32, i32
  }
  func.func @transform_3(%arg0: i32) -> (i32, i32) {
    %c0_i32 = arith.constant 0 : i32
    %c0_i32_0 = arith.constant 0 : i32
    %c0_i32_1 = arith.constant 0 : i32
    return %c0_i32, %c0_i32_0 : i32, i32
  }
  func.func @transform_4(%arg0: i32) -> (i32, i32) {
    %c0_i32 = arith.constant 0 : i32
    %c0_i32_0 = arith.constant 0 : i32
    %c0_i32_1 = arith.constant 0 : i32
    return %c0_i32, %c0_i32_0 : i32, i32
  }
  func.func @transform_5(%arg0: i32) -> (i32, i32) {
    %c0_i32 = arith.constant 0 : i32
    %c0_i32_0 = arith.constant 0 : i32
    return %arg0, %c0_i32 : i32, i32
  }
}

</mosaic_0001>

<llo_original>
// kernel: net_forward.1
$region0: #{net_forward.1}
  #allocation0 [shape = 'u32[]', space=smem, size = 0x4, offset = 0x4, fixed_abs, tag = 'smem constant byte address 0x4 - core index']
  #allocation1 [shape = 'u32[144,128]{1,0:T(1,128)}', space=vmem, size = 0x12000, scoped, tag = 'internal scratch']
  %s0 = inlined_call_operand.vmem [shape: f32[8,128], index: 0, kind: input, shape index: {}]
  %s1 = inlined_call_operand.hbm [shape: bf16[128,128], index: 1, kind: input, shape index: {}]
  %s2 = inlined_call_operand.hbm [shape: bf16[3,128,128], index: 2, kind: input, shape index: {}]
  %s3 = inlined_call_operand.hbm [shape: bf16[128,128], index: 3, kind: input, shape index: {}]
  %s4 = inlined_call_operand.vmem [shape: f32[8,128], index: 4, kind: input, shape index: {}]
  %s5 = inlined_call_operand.vmem [shape: f32[8,128], index: 5, kind: output, shape index: {}]
  %s6 = sld [smem:[#allocation0]]
  $region42: #{net_forward.1} parent=0
    _
  %s8 = ssub.s32 1, %s6
  %s9 = scalar_select 0, %s8, %s6
  $region1: #{net_forward.1} parent=0
    #allocation2 [shape = 'u8[32768]{0}', space=vmem, size = 0x8000, scoped, tag = 'input window, operand 1, single buffered']
    #allocation3 [shape = 's32[1]{0}', space=sflag, size = 0x4, scoped, tag = 'scoped memory for net_forward.1']
    #allocation4 [shape = 'u8[98304]{0}', space=vmem, size = 0x18000, scoped, tag = 'input window, operand 2, single buffered']
    #allocation5 [shape = 's32[1]{0}', space=sflag, size = 0x4, scoped, tag = 'scoped memory for net_forward.1']
    #allocation6 [shape = 'u8[32768]{0}', space=vmem, size = 0x8000, scoped, tag = 'input window, operand 3, single buffered']
    %10 = vsyncpa [#allocation3], 0
    %11 = vsyncpa [#allocation5], 0
    // Predicated region
    $region2: #{net_forward.1} parent=1 // pred_check
      _
    $region3: #{net_forward.1} parent=1 // pred_check_branch
      %13 = sbr.rel (0) target = $region5
    $region4: #{net_forward.1} parent=1 // pred_region
      _
    $region5: #{net_forward.1} parent=1 // pred_fallthru
      _
    // Predicated region
    $region6: #{net_forward.1} parent=1 // pred_check
      _
    $region7: #{net_forward.1} parent=1 // pred_check_branch
      %15 = sbr.rel (0) target = $region9
    $region8: #{net_forward.1} parent=1 // pred_region
      %s17 = ssub.s32 1024, 1024
      %18 = vsyncadd [#allocation3], %s17
      %s19 = sshll.u32 [#allocation2], 4
      %s20 = int_to_ptr.vmem [resolvable:$true] %s19
      %25 = dma.hbm_to_vmem [thread:$0]  %s1, 1024, %s20, [#allocation3], 64, 64, 4
    $region9: #{net_forward.1} parent=1 // pred_fallthru
      _
    // Predicated region
    $region10: #{net_forward.1} parent=1 // pred_check
      _
    $region11: #{net_forward.1} parent=1 // pred_check_branch
      %27 = sbr.rel (0) target = $region13
    $region12: #{net_forward.1} parent=1 // pred_region
      %s29 = ssub.s32 3072, 3072
      %30 = vsyncadd [#allocation5], %s29
      %s31 = sshll.u32 [#allocation4], 4
      %s32 = int_to_ptr.vmem [resolvable:$true] %s31
      %37 = dma.hbm_to_vmem [thread:$0]  %s2, 3072, %s32, [#allocation5], 64, 64, 4
    $region13: #{net_forward.1} parent=1 // pred_fallthru
      _
    // Predicated region
    $region14: #{net_forward.1} parent=1 // pred_check
      _
    $region15: #{net_forward.1} parent=1 // pred_check_branch
      %39 = sbr.rel (0) target = $region17
    $region16: #{net_forward.1} parent=1 // pred_region
      %s41 = ssub.s32 1024, 1024
      %42 = vsyncadd [#allocation5], %s41
      %s43 = sshll.u32 [#allocation6], 4
      %s44 = int_to_ptr.vmem [resolvable:$true] %s43
      %49 = dma.hbm_to_vmem [thread:$0]  %s3, 1024, %s44, [#allocation5], 64, 64, 4
    $region17: #{net_forward.1} parent=1 // pred_fallthru
      _
    // Predicated region
    $region18: #{net_forward.1} parent=1 // pred_check
      _
    $region19: #{net_forward.1} parent=1 // pred_check_branch
      %51 = sbr.rel (0) target = $region21
    $region20: #{net_forward.1} parent=1 // pred_region
      _
    $region21: #{net_forward.1} parent=1 // pred_fallthru
      _
    // Predicated region
    $region22: #{net_forward.1} parent=1 // pred_check
      _
    $region23: #{net_forward.1} parent=1 // pred_check_branch
      %53 = sbr.rel (0) target = $region25
    $region24: #{net_forward.1} parent=1 // pred_region
      %54 = dma.done [#allocation3], 1024
    $region25: #{net_forward.1} parent=1 // pred_fallthru
      _
    // Predicated region
    $region26: #{net_forward.1} parent=1 // pred_check
      _
    $region27: #{net_forward.1} parent=1 // pred_check_branch
      %56 = sbr.rel (0) target = $region29
    $region28: #{net_forward.1} parent=1 // pred_region
      %57 = dma.done [#allocation5], 3072
    $region29: #{net_forward.1} parent=1 // pred_fallthru
      _
    // Predicated region
    $region30: #{net_forward.1} parent=1 // pred_check
      _
    $region31: #{net_forward.1} parent=1 // pred_check_branch
      %59 = sbr.rel (0) target = $region33
    $region32: #{net_forward.1} parent=1 // pred_region
      %60 = dma.done [#allocation5], 1024
    $region33: #{net_forward.1} parent=1 // pred_fallthru
      _
    %v62 = vld [vmem:[%s4] sm:$0xff]
    %v63 = vld [vmem:[%s0] sm:$0xff]
    %v64 = vpack.c.bf16 %v63, %v63
    %v65 = vld [vmem:[#allocation2] sm:$0xf]
    %v66 = vld [vmem:[#allocation2 + $0x4] sm:$0xf]
    %v67 = vld [vmem:[#allocation2 + $0x8] sm:$0xf]
    %v68 = vld [vmem:[#allocation2 + $0xc] sm:$0xf]
    %v69 = vld [vmem:[#allocation2 + $0x10] sm:$0xf]
    %v70 = vld [vmem:[#allocation2 + $0x14] sm:$0xf]
    %v71 = vld [vmem:[#allocation2 + $0x18] sm:$0xf]
    %v72 = vld [vmem:[#allocation2 + $0x1c] sm:$0xf]
    %v73 = vld [vmem:[#allocation2 + $0x20] sm:$0xf]
    %v74 = vld [vmem:[#allocation2 + $0x24] sm:$0xf]
    %v75 = vld [vmem:[#allocation2 + $0x28] sm:$0xf]
    %v76 = vld [vmem:[#allocation2 + $0x2c] sm:$0xf]
    %v77 = vld [vmem:[#allocation2 + $0x30] sm:$0xf]
    %v78 = vld [vmem:[#allocation2 + $0x34] sm:$0xf]
    %v79 = vld [vmem:[#allocation2 + $0x38] sm:$0xf]
    %v80 = vld [vmem:[#allocation2 + $0x3c] sm:$0xf]
    %v81 = vlaneseq
    %v82 = vshrl.u32 %v81, 7
    %v83 = vsub.s32 0, %v82
    %v84 = vrot.slane %v62, %v83
    %v101 = vunpack.c.l.b16 %v65
    %v102 = vunpack.c.l.b16 %v66
    %v103 = vunpack.c.l.b16 %v67
    %v104 = vunpack.c.l.b16 %v68
    %v105 = vunpack.c.l.b16 %v69
    %v106 = vunpack.c.l.b16 %v70
    %v107 = vunpack.c.l.b16 %v71
    %v108 = vunpack.c.l.b16 %v72
    %v109 = vunpack.c.l.b16 %v73
    %v110 = vunpack.c.l.b16 %v74
    %v111 = vunpack.c.l.b16 %v75
    %v112 = vunpack.c.l.b16 %v76
    %v113 = vunpack.c.l.b16 %v77
    %v114 = vunpack.c.l.b16 %v78
    %v115 = vunpack.c.l.b16 %v79
    %v116 = vunpack.c.l.b16 %v80
    %v117 = vpack.c.b16 %v102, %v101
    %v118 = vpack.c.b16 %v104, %v103
    %v119 = vpack.c.b16 %v106, %v105
    %v120 = vpack.c.b16 %v108, %v107
    %v121 = vpack.c.b16 %v110, %v109
    %v122 = vpack.c.b16 %v112, %v111
    %v123 = vpack.c.b16 %v114, %v113
    %v124 = vpack.c.b16 %v116, %v115
    %133 = vmatprep.subr.bf16.mxu0 0
    %134 = vmatpush1.bf16.msra.mxu0 %v117
    %135 = vmatprep.subr.bf16.mxu0 0
    %136 = vmatpush1.bf16.msra.mxu0 %v118
    %137 = vmatprep.subr.bf16.mxu0 0
    %138 = vmatpush1.bf16.msra.mxu0 %v119
    %139 = vmatprep.subr.bf16.mxu0 0
    %140 = vmatpush1.bf16.msra.mxu0 %v120
    %141 = vmatprep.subr.bf16.mxu0 0
    %142 = vmatpush1.bf16.msra.mxu0 %v121
    %143 = vmatprep.subr.bf16.mxu0 0
    %144 = vmatpush1.bf16.msra.mxu0 %v122
    %145 = vmatprep.subr.bf16.mxu0 0
    %146 = vmatpush1.bf16.msra.mxu0 %v123
    %147 = vmatprep.subr.bf16.mxu0 0
    %148 = vmatpush1.bf16.msra.mxu0 %v124
    %149 = vmatprep.subr.bf16.mxu0 0
    %150 = vmatpush1.bf16.msra.mxu0 0
    %151 = vmatprep.subr.bf16.mxu0 0
    %152 = vmatpush1.bf16.msra.mxu0 0
    %153 = vmatprep.subr.bf16.mxu0 0
    %154 = vmatpush1.bf16.msra.mxu0 0
    %155 = vmatprep.subr.bf16.mxu0 0
    %156 = vmatpush1.bf16.msra.mxu0 0
    %157 = vmatprep.subr.bf16.mxu0 0
    %158 = vmatpush1.bf16.msra.mxu0 0
    %159 = vmatprep.subr.bf16.mxu0 0
    %160 = vmatpush1.bf16.msra.mxu0 0
    %161 = vmatprep.subr.bf16.mxu0 0
    %162 = vmatpush1.bf16.msra.mxu0 0
    %163 = vmatprep.subr.bf16.mxu0 0
    %164 = vmatpush1.bf16.msra.mxu0 0
    %165 = vmatprep.mubr.bf16.mxu0 0
    %166 = vmatmul.mubr.bf16.gmra.mrb[0].mxu0 %v64
    %v167 = vpop.f32.mrb[0].mxu0
    %v168 = vadd.f32 %v84, %v167
    %v169 = vpop.f32.mrb[0].mxu0
    %v170 = vpop.f32.mrb[0].mxu0
    %v171 = vpop.f32.mrb[0].mxu0
    %172 = vdwg.mxu0
    %v173 = vmax.f32 %v168, 0.0
    %v174 = vpack.c.bf16 %v173, %v173
    %v175 = vld [vmem:[#allocation4] sm:$0xf]
    %v176 = vld [vmem:[#allocation4 + $0x4] sm:$0xf]
    %v177 = vld [vmem:[#allocation4 + $0x8] sm:$0xf]
    %v178 = vld [vmem:[#allocation4 + $0xc] sm:$0xf]
    %v179 = vld [vmem:[#allocation4 + $0x10] sm:$0xf]
    %v180 = vld [vmem:[#allocation4 + $0x14] sm:$0xf]
    %v181 = vld [vmem:[#allocation4 + $0x18] sm:$0xf]
    %v182 = vld [vmem:[#allocation4 + $0x1c] sm:$0xf]
    %v183 = vld [vmem:[#allocation4 + $0x20] sm:$0xf]
    %v184 = vld [vmem:[#allocation4 + $0x24] sm:$0xf]
    %v185 = vld [vmem:[#allocation4 + $0x28] sm:$0xf]
    %v186 = vld [vmem:[#allocation4 + $0x2c] sm:$0xf]
    %v187 = vld [vmem:[#allocation4 + $0x30] sm:$0xf]
    %v188 = vld [vmem:[#allocation4 + $0x34] sm:$0xf]
    %v189 = vld [vmem:[#allocation4 + $0x38] sm:$0xf]
    %v190 = vld [vmem:[#allocation4 + $0x3c] sm:$0xf]
    %v191 = vlaneseq
    %v192 = vshrl.u32 %v191, 7
    %v193 = vsub.s32 1, %v192
    %v194 = vrot.slane %v62, %v193
    %v211 = vunpack.c.l.b16 %v175
    %v212 = vunpack.c.l.b16 %v176
    %v213 = vunpack.c.l.b16 %v177
    %v214 = vunpack.c.l.b16 %v178
    %v215 = vunpack.c.l.b16 %v179
    %v216 = vunpack.c.l.b16 %v180
    %v217 = vunpack.c.l.b16 %v181
    %v218 = vunpack.c.l.b16 %v182
    %v219 = vunpack.c.l.b16 %v183
    %v220 = vunpack.c.l.b16 %v184
    %v221 = vunpack.c.l.b16 %v185
    %v222 = vunpack.c.l.b16 %v186
    %v223 = vunpack.c.l.b16 %v187
    %v224 = vunpack.c.l.b16 %v188
    %v225 = vunpack.c.l.b16 %v189
    %v226 = vunpack.c.l.b16 %v190
    %v227 = vpack.c.b16 %v212, %v211
    %v228 = vpack.c.b16 %v214, %v213
    %v229 = vpack.c.b16 %v216, %v215
    %v230 = vpack.c.b16 %v218, %v217
    %v231 = vpack.c.b16 %v220, %v219
    %v232 = vpack.c.b16 %v222, %v221
    %v233 = vpack.c.b16 %v224, %v223
    %v234 = vpack.c.b16 %v226, %v225
    %243 = vmatprep.subr.bf16.mxu0 0
    %244 = vmatpush1.bf16.msra.mxu0 %v227
    %245 = vmatprep.subr.bf16.mxu0 0
    %246 = vmatpush1.bf16.msra.mxu0 %v228
    %247 = vmatprep.subr.bf16.mxu0 0
    %248 = vmatpush1.bf16.msra.mxu0 %v229
    %249 = vmatprep.subr.bf16.mxu0 0
    %250 = vmatpush1.bf16.msra.mxu0 %v230
    %251 = vmatprep.subr.bf16.mxu0 0
    %252 = vmatpush1.bf16.msra.mxu0 %v231
    %253 = vmatprep.subr.bf16.mxu0 0
    %254 = vmatpush1.bf16.msra.mxu0 %v232
    %255 = vmatprep.subr.bf16.mxu0 0
    %256 = vmatpush1.bf16.msra.mxu0 %v233
    %257 = vmatprep.subr.bf16.mxu0 0
    %258 = vmatpush1.bf16.msra.mxu0 %v234
    %259 = vmatprep.subr.bf16.mxu0 0
    %260 = vmatpush1.bf16.msra.mxu0 0
    %261 = vmatprep.subr.bf16.mxu0 0
    %262 = vmatpush1.bf16.msra.mxu0 0
    %263 = vmatprep.subr.bf16.mxu0 0
    %264 = vmatpush1.bf16.msra.mxu0 0
    %265 = vmatprep.subr.bf16.mxu0 0
    %266 = vmatpush1.bf16.msra.mxu0 0
    %267 = vmatprep.subr.bf16.mxu0 0
    %268 = vmatpush1.bf16.msra.mxu0 0
    %269 = vmatprep.subr.bf16.mxu0 0
    %270 = vmatpush1.bf16.msra.mxu0 0
    %271 = vmatprep.subr.bf16.mxu0 0
    %272 = vmatpush1.bf16.msra.mxu0 0
    %273 = vmatprep.subr.bf16.mxu0 0
    %274 = vmatpush1.bf16.msra.mxu0 0
    %275 = vmatprep.mubr.bf16.mxu0 0
    %276 = vmatmul.mubr.bf16.gmra.mrb[0].mxu0 %v174
    %v277 = vpop.f32.mrb[0].mxu0
    %v278 = vadd.f32 %v194, %v277
    %v279 = vpop.f32.mrb[0].mxu0
    %v280 = vpop.f32.mrb[0].mxu0
    %v281 = vpop.f32.mrb[0].mxu0
    %282 = vdwg.mxu0
    %v283 = vmax.f32 %v278, 0.0
    %v284 = vpack.c.bf16 %v283, %v283
    %s285 = scalar_lea.vmem [#allocation4], 64
    %v286 = vld [vmem:[%s285] sm:$0xf]
    %v287 = vld [vmem:[%s285 + $0x4] sm:$0xf]
    %v288 = vld [vmem:[%s285 + $0x8] sm:$0xf]
    %v289 = vld [vmem:[%s285 + $0xc] sm:$0xf]
    %v290 = vld [vmem:[%s285 + $0x10] sm:$0xf]
    %v291 = vld [vmem:[%s285 + $0x14] sm:$0xf]
    %v292 = vld [vmem:[%s285 + $0x18] sm:$0xf]
    %v293 = vld [vmem:[%s285 + $0x1c] sm:$0xf]
    %v294 = vld [vmem:[%s285 + $0x20] sm:$0xf]
    %v295 = vld [vmem:[%s285 + $0x24] sm:$0xf]
    %v296 = vld [vmem:[%s285 + $0x28] sm:$0xf]
    %v297 = vld [vmem:[%s285 + $0x2c] sm:$0xf]
    %v298 = vld [vmem:[%s285 + $0x30] sm:$0xf]
    %v299 = vld [vmem:[%s285 + $0x34] sm:$0xf]
    %v300 = vld [vmem:[%s285 + $0x38] sm:$0xf]
    %v301 = vld [vmem:[%s285 + $0x3c] sm:$0xf]
    %v302 = vlaneseq
    %v303 = vshrl.u32 %v302, 7
    %v304 = vsub.s32 2, %v303
    %v305 = vrot.slane %v62, %v304
    %v322 = vunpack.c.l.b16 %v286
    %v323 = vunpack.c.l.b16 %v287
    %v324 = vunpack.c.l.b16 %v288
    %v325 = vunpack.c.l.b16 %v289
    %v326 = vunpack.c.l.b16 %v290
    %v327 = vunpack.c.l.b16 %v291
    %v328 = vunpack.c.l.b16 %v292
    %v329 = vunpack.c.l.b16 %v293
    %v330 = vunpack.c.l.b16 %v294
    %v331 = vunpack.c.l.b16 %v295
    %v332 = vunpack.c.l.b16 %v296
    %v333 = vunpack.c.l.b16 %v297
    %v334 = vunpack.c.l.b16 %v298
    %v335 = vunpack.c.l.b16 %v299
    %v336 = vunpack.c.l.b16 %v300
    %v337 = vunpack.c.l.b16 %v301
    %v338 = vpack.c.b16 %v323, %v322
    %v339 = vpack.c.b16 %v325, %v324
    %v340 = vpack.c.b16 %v327, %v326
    %v341 = vpack.c.b16 %v329, %v328
    %v342 = vpack.c.b16 %v331, %v330
    %v343 = vpack.c.b16 %v333, %v332
    %v344 = vpack.c.b16 %v335, %v334
    %v345 = vpack.c.b16 %v337, %v336
    %354 = vmatprep.subr.bf16.mxu0 0
    %355 = vmatpush1.bf16.msra.mxu0 %v338
    %356 = vmatprep.subr.bf16.mxu0 0
    %357 = vmatpush1.bf16.msra.mxu0 %v339
    %358 = vmatprep.subr.bf16.mxu0 0
    %359 = vmatpush1.bf16.msra.mxu0 %v340
    %360 = vmatprep.subr.bf16.mxu0 0
    %361 = vmatpush1.bf16.msra.mxu0 %v341
    %362 = vmatprep.subr.bf16.mxu0 0
    %363 = vmatpush1.bf16.msra.mxu0 %v342
    %364 = vmatprep.subr.bf16.mxu0 0
    %365 = vmatpush1.bf16.msra.mxu0 %v343
    %366 = vmatprep.subr.bf16.mxu0 0
    %367 = vmatpush1.bf16.msra.mxu0 %v344
    %368 = vmatprep.subr.bf16.mxu0 0
    %369 = vmatpush1.bf16.msra.mxu0 %v345
    %370 = vmatprep.subr.bf16.mxu0 0
    %371 = vmatpush1.bf16.msra.mxu0 0
    %372 = vmatprep.subr.bf16.mxu0 0
    %373 = vmatpush1.bf16.msra.mxu0 0
    %374 = vmatprep.subr.bf16.mxu0 0
    %375 = vmatpush1.bf16.msra.mxu0 0
    %376 = vmatprep.subr.bf16.mxu0 0
    %377 = vmatpush1.bf16.msra.mxu0 0
    %378 = vmatprep.subr.bf16.mxu0 0
    %379 = vmatpush1.bf16.msra.mxu0 0
    %380 = vmatprep.subr.bf16.mxu0 0
    %381 = vmatpush1.bf16.msra.mxu0 0
    %382 = vmatprep.subr.bf16.mxu0 0
    %383 = vmatpush1.bf16.msra.mxu0 0
    %384 = vmatprep.subr.bf16.mxu0 0
    %385 = vmatpush1.bf16.msra.mxu0 0
    %386 = vmatprep.mubr.bf16.mxu0 0
    %387 = vmatmul.mubr.bf16.gmra.mrb[0].mxu0 %v284
    %v388 = vpop.f32.mrb[0].mxu0
    %v389 = vadd.f32 %v305, %v388
    %v390 = vpop.f32.mrb[0].mxu0
    %v391 = vpop.f32.mrb[0].mxu0
    %v392 = vpop.f32.mrb[0].mxu0
    %393 = vdwg.mxu0
    %v394 = vmax.f32 %v389, 0.0
    %v395 = vpack.c.bf16 %v394, %v394
    %s396 = scalar_lea.vmem [#allocation4], 128
    %v397 = vld [vmem:[%s396] sm:$0xf]
    %v398 = vld [vmem:[%s396 + $0x4] sm:$0xf]
    %v399 = vld [vmem:[%s396 + $0x8] sm:$0xf]
    %v400 = vld [vmem:[%s396 + $0xc] sm:$0xf]
    %v401 = vld [vmem:[%s396 + $0x10] sm:$0xf]
    %v402 = vld [vmem:[%s396 + $0x14] sm:$0xf]
    %v403 = vld [vmem:[%s396 + $0x18] sm:$0xf]
    %v404 = vld [vmem:[%s396 + $0x1c] sm:$0xf]
    %v405 = vld [vmem:[%s396 + $0x20] sm:$0xf]
    %v406 = vld [vmem:[%s396 + $0x24] sm:$0xf]
    %v407 = vld [vmem:[%s396 + $0x28] sm:$0xf]
    %v408 = vld [vmem:[%s396 + $0x2c] sm:$0xf]
    %v409 = vld [vmem:[%s396 + $0x30] sm:$0xf]
    %v410 = vld [vmem:[%s396 + $0x34] sm:$0xf]
    %v411 = vld [vmem:[%s396 + $0x38] sm:$0xf]
    %v412 = vld [vmem:[%s396 + $0x3c] sm:$0xf]
    %v413 = vlaneseq
    %v414 = vshrl.u32 %v413, 7
    %v415 = vsub.s32 3, %v414
    %v416 = vrot.slane %v62, %v415
    %v433 = vunpack.c.l.b16 %v397
    %v434 = vunpack.c.l.b16 %v398
    %v435 = vunpack.c.l.b16 %v399
    %v436 = vunpack.c.l.b16 %v400
    %v437 = vunpack.c.l.b16 %v401
    %v438 = vunpack.c.l.b16 %v402
    %v439 = vunpack.c.l.b16 %v403
    %v440 = vunpack.c.l.b16 %v404
    %v441 = vunpack.c.l.b16 %v405
    %v442 = vunpack.c.l.b16 %v406
    %v443 = vunpack.c.l.b16 %v407
    %v444 = vunpack.c.l.b16 %v408
    %v445 = vunpack.c.l.b16 %v409
    %v446 = vunpack.c.l.b16 %v410
    %v447 = vunpack.c.l.b16 %v411
    %v448 = vunpack.c.l.b16 %v412
    %v449 = vpack.c.b16 %v434, %v433
    %v450 = vpack.c.b16 %v436, %v435
    %v451 = vpack.c.b16 %v438, %v437
    %v452 = vpack.c.b16 %v440, %v439
    %v453 = vpack.c.b16 %v442, %v441
    %v454 = vpack.c.b16 %v444, %v443
    %v455 = vpack.c.b16 %v446, %v445
    %v456 = vpack.c.b16 %v448, %v447
    %465 = vmatprep.subr.bf16.mxu0 0
    %466 = vmatpush1.bf16.msra.mxu0 %v449
    %467 = vmatprep.subr.bf16.mxu0 0
    %468 = vmatpush1.bf16.msra.mxu0 %v450
    %469 = vmatprep.subr.bf16.mxu0 0
    %470 = vmatpush1.bf16.msra.mxu0 %v451
    %471 = vmatprep.subr.bf16.mxu0 0
    %472 = vmatpush1.bf16.msra.mxu0 %v452
    %473 = vmatprep.subr.bf16.mxu0 0
    %474 = vmatpush1.bf16.msra.mxu0 %v453
    %475 = vmatprep.subr.bf16.mxu0 0
    %476 = vmatpush1.bf16.msra.mxu0 %v454
    %477 = vmatprep.subr.bf16.mxu0 0
    %478 = vmatpush1.bf16.msra.mxu0 %v455
    %479 = vmatprep.subr.bf16.mxu0 0
    %480 = vmatpush1.bf16.msra.mxu0 %v456
    %481 = vmatprep.subr.bf16.mxu0 0
    %482 = vmatpush1.bf16.msra.mxu0 0
    %483 = vmatprep.subr.bf16.mxu0 0
    %484 = vmatpush1.bf16.msra.mxu0 0
    %485 = vmatprep.subr.bf16.mxu0 0
    %486 = vmatpush1.bf16.msra.mxu0 0
    %487 = vmatprep.subr.bf16.mxu0 0
    %488 = vmatpush1.bf16.msra.mxu0 0
    %489 = vmatprep.subr.bf16.mxu0 0
    %490 = vmatpush1.bf16.msra.mxu0 0
    %491 = vmatprep.subr.bf16.mxu0 0
    %492 = vmatpush1.bf16.msra.mxu0 0
    %493 = vmatprep.subr.bf16.mxu0 0
    %494 = vmatpush1.bf16.msra.mxu0 0
    %495 = vmatprep.subr.bf16.mxu0 0
    %496 = vmatpush1.bf16.msra.mxu0 0
    %497 = vmatprep.mubr.bf16.mxu0 0
    %498 = vmatmul.mubr.bf16.gmra.mrb[0].mxu0 %v395
    %v499 = vpop.f32.mrb[0].mxu0
    %v500 = vadd.f32 %v416, %v499
    %v501 = vpop.f32.mrb[0].mxu0
    %v502 = vpop.f32.mrb[0].mxu0
    %v503 = vpop.f32.mrb[0].mxu0
    %504 = vdwg.mxu0
    %v505 = vmax.f32 %v500, 0.0
    %v506 = vpack.c.bf16 %v505, %v505
    %v507 = vld [vmem:[#allocation6] sm:$0xf]
    %v508 = vld [vmem:[#allocation6 + $0x4] sm:$0xf]
    %v509 = vld [vmem:[#allocation6 + $0x8] sm:$0xf]
    %v510 = vld [vmem:[#allocation6 + $0xc] sm:$0xf]
    %v511 = vld [vmem:[#allocation6 + $0x10] sm:$0xf]
    %v512 = vld [vmem:[#allocation6 + $0x14] sm:$0xf]
    %v513 = vld [vmem:[#allocation6 + $0x18] sm:$0xf]
    %v514 = vld [vmem:[#allocation6 + $0x1c] sm:$0xf]
    %v515 = vld [vmem:[#allocation6 + $0x20] sm:$0xf]
    %v516 = vld [vmem:[#allocation6 + $0x24] sm:$0xf]
    %v517 = vld [vmem:[#allocation6 + $0x28] sm:$0xf]
    %v518 = vld [vmem:[#allocation6 + $0x2c] sm:$0xf]
    %v519 = vld [vmem:[#allocation6 + $0x30] sm:$0xf]
    %v520 = vld [vmem:[#allocation6 + $0x34] sm:$0xf]
    %v521 = vld [vmem:[#allocation6 + $0x38] sm:$0xf]
    %v522 = vld [vmem:[#allocation6 + $0x3c] sm:$0xf]
    %v523 = vlaneseq
    %v524 = vshrl.u32 %v523, 7
    %v525 = vsub.s32 4, %v524
    %v526 = vrot.slane %v62, %v525
    %v543 = vunpack.c.l.b16 %v507
    %v544 = vunpack.c.l.b16 %v508
    %v545 = vunpack.c.l.b16 %v509
    %v546 = vunpack.c.l.b16 %v510
    %v547 = vunpack.c.l.b16 %v511
    %v548 = vunpack.c.l.b16 %v512
    %v549 = vunpack.c.l.b16 %v513
    %v550 = vunpack.c.l.b16 %v514
    %v551 = vunpack.c.l.b16 %v515
    %v552 = vunpack.c.l.b16 %v516
    %v553 = vunpack.c.l.b16 %v517
    %v554 = vunpack.c.l.b16 %v518
    %v555 = vunpack.c.l.b16 %v519
    %v556 = vunpack.c.l.b16 %v520
    %v557 = vunpack.c.l.b16 %v521
    %v558 = vunpack.c.l.b16 %v522
    %v559 = vpack.c.b16 %v544, %v543
    %v560 = vpack.c.b16 %v546, %v545
    %v561 = vpack.c.b16 %v548, %v547
    %v562 = vpack.c.b16 %v550, %v549
    %v563 = vpack.c.b16 %v552, %v551
    %v564 = vpack.c.b16 %v554, %v553
    %v565 = vpack.c.b16 %v556, %v555
    %v566 = vpack.c.b16 %v558, %v557
    %575 = vmatprep.subr.bf16.mxu0 0
    %576 = vmatpush1.bf16.msra.mxu0 %v559
    %577 = vmatprep.subr.bf16.mxu0 0
    %578 = vmatpush1.bf16.msra.mxu0 %v560
    %579 = vmatprep.subr.bf16.mxu0 0
    %580 = vmatpush1.bf16.msra.mxu0 %v561
    %581 = vmatprep.subr.bf16.mxu0 0
    %582 = vmatpush1.bf16.msra.mxu0 %v562
    %583 = vmatprep.subr.bf16.mxu0 0
    %584 = vmatpush1.bf16.msra.mxu0 %v563
    %585 = vmatprep.subr.bf16.mxu0 0
    %586 = vmatpush1.bf16.msra.mxu0 %v564
    %587 = vmatprep.subr.bf16.mxu0 0
    %588 = vmatpush1.bf16.msra.mxu0 %v565
    %589 = vmatprep.subr.bf16.mxu0 0
    %590 = vmatpush1.bf16.msra.mxu0 %v566
    %591 = vmatprep.subr.bf16.mxu0 0
    %592 = vmatpush1.bf16.msra.mxu0 0
    %593 = vmatprep.subr.bf16.mxu0 0
    %594 = vmatpush1.bf16.msra.mxu0 0
    %595 = vmatprep.subr.bf16.mxu0 0
    %596 = vmatpush1.bf16.msra.mxu0 0
    %597 = vmatprep.subr.bf16.mxu0 0
    %598 = vmatpush1.bf16.msra.mxu0 0
    %599 = vmatprep.subr.bf16.mxu0 0
    %600 = vmatpush1.bf16.msra.mxu0 0
    %601 = vmatprep.subr.bf16.mxu0 0
    %602 = vmatpush1.bf16.msra.mxu0 0
    %603 = vmatprep.subr.bf16.mxu0 0
    %604 = vmatpush1.bf16.msra.mxu0 0
    %605 = vmatprep.subr.bf16.mxu0 0
    %606 = vmatpush1.bf16.msra.mxu0 0
    %607 = vmatprep.mubr.bf16.mxu0 0
    %608 = vmatmul.mubr.bf16.gmra.mrb[0].mxu0 %v506
    %v609 = vpop.f32.mrb[0].mxu0
    %v610 = vadd.f32 %v526, %v609
    %v611 = vpop.f32.mrb[0].mxu0
    %v612 = vpop.f32.mrb[0].mxu0
    %v613 = vpop.f32.mrb[0].mxu0
    %614 = vdwg.mxu0
    %615 = vst [vmem:[%s5] sm:$0xff] %v610
    // Predicated region
    $region34: #{net_forward.1} parent=1 // pred_check
      _
    $region35: #{net_forward.1} parent=1 // pred_check_branch
      %617 = sbr.rel (0) target = $region37
    $region36: #{net_forward.1} parent=1 // pred_region
      _
    $region37: #{net_forward.1} parent=1 // pred_fallthru
      _
    // Predicated region
    $region38: #{net_forward.1} parent=1 // pred_check
      _
    $region39: #{net_forward.1} parent=1 // pred_check_branch
      %619 = sbr.rel (0) target = $region41
    $region40: #{net_forward.1} parent=1 // pred_region
      _
    $region41: #{net_forward.1} parent=1 // pred_fallthru
      _
    %620 = vsyncpa [#allocation3], 1
    %621 = vsyncpa [#allocation5], 1

</llo_original>
